<compile_context>
chip_gen: v7x
topology: tpu7x:2x2x1
jax: 0.10.0
libtpu: 0.0.40
codegen_flags: <defaults>
</compile_context>

<pallas_src>
import functools

import jax
import jax.numpy as jnp
from jax.experimental import pallas as pl
from jax.experimental.pallas import tpu as pltpu


def _round_up(a, b):
    return (a + b - 1) // b * b


def _vmem_budget_bytes():
    """Per-core VMEM capacity (64 MiB on v7x, 128 MiB on v5e/v6e)."""
    try:
        return int(pltpu.get_tpu_info().vmem_capacity_bytes)
    except Exception:
        return 64 << 20  # conservative (v7x-sized) fallback


def _default_tm():
    """Row tile near the MXU/HBM crossover: ~256 on v5e, ~512 on v6e/v7x."""
    try:
        kind = jax.devices()[0].device_kind.lower()
    except Exception:
        return 512
    if "v5 lite" in kind or "v5e" in kind or "v5lite" in kind:
        return 256
    return 512


def _spec(shape, index_map, single_buffer=False):
    """BlockSpec; optionally single-buffered for blocks whose index ignores the
    reduction axis (double-buffering them only wastes VMEM)."""
    if single_buffer:
        try:
            return pl.BlockSpec(shape, index_map, pipeline_mode=pl.Buffered(1))
        except Exception:  # older jax without pipeline_mode / Buffered
            pass
    return pl.BlockSpec(shape, index_map)


def _mlp_kernel(x_ref, wgu_ref, wd_ref, o_ref, acc_ref):
    """One (row-tile, I-tile) step: fused gate/up matmul, SiLU*up, down accum."""
    j = pl.program_id(1)

    @pl.when(j == 0)
    def _():
        acc_ref[...] = jnp.zeros_like(acc_ref)

    ti = wgu_ref.shape[1] // 2                                 # static
    x = x_ref[...]
    if x.dtype != wgu_ref.dtype:
        # Stream-narrow-weights path: do the matmul at the weight precision
        # (bf16 MXU), accumulate in f32.
        x = x.astype(wgu_ref.dtype)
    gu = jnp.dot(x, wgu_ref[...],
                 preferred_element_type=jnp.float32)           # (tm, 2*ti) f32
    g = gu[:, :ti]
    u = gu[:, ti:]
    h = (g * jax.nn.sigmoid(g)) * u                            # SiLU(gate)*up, f32
    acc_ref[...] += jnp.dot(h.astype(wd_ref.dtype), wd_ref[...],
                            preferred_element_type=jnp.float32)

    @pl.when(j == pl.num_programs(1) - 1)
    def _():
        o_ref[...] = acc_ref[...].astype(o_ref.dtype)


def pack_llama_mlp_weights(w_gate, w_up, w_down, *, ti=None, weight_dtype=None):
    """Pack gate/up into an I-tile-interleaved [H, 2*I_pad] weight (done once).

    w_gate/w_up: [H, I] (transposed vs. torch nn.Linear storage), w_down: [I, H].
    weight_dtype: optional cast (e.g. jnp.bfloat16). The kernel is weight-
      bandwidth-bound, so narrower weights give a near-proportional speedup.
    ti=None auto-picks 512 for <=16-bit weights; 256 for f32 weights when the
      per-core VMEM budget is small (v7x), so the double-buffered weight tiles
      always fit.
    Returns (w_gu [H, 2*I_pad], w_down_padded [I_pad, H], effective ti).
    """
    if weight_dtype is not None:
        w_gate = w_gate.astype(weight_dtype)
        w_up = w_up.astype(weight_dtype)
        w_down = w_down.astype(weight_dtype)

    H, I = w_gate.shape
    bw = w_gate.dtype.itemsize
    if ti is None:
        ti = 512 if (bw <= 2 or _vmem_budget_bytes() > (96 << 20)) else 256

    if I <= ti:
        # Single I tile; keep it lane-aligned so the gate/up split in the
        # kernel sits on a 128-lane boundary.
        ti_eff = i_pad = _round_up(I, 128)
    else:
        assert ti % 128 == 0, "ti must be a multiple of 128 when I is tiled"
        ti_eff, i_pad = ti, _round_up(I, ti)

    pad = i_pad - I
    wg = jnp.pad(w_gate, ((0, 0), (0, pad)))
    wu = jnp.pad(w_up, ((0, 0), (0, pad)))
    wd = jnp.pad(w_down, ((0, pad), (0, 0)))
    nt = i_pad // ti_eff
    # Interleave per I-tile: [..., gate_j, up_j, ...] along the last axis.
    w_gu = jnp.concatenate(
        [wg.reshape(H, nt, ti_eff), wu.reshape(H, nt, ti_eff)], axis=2
    ).reshape(H, 2 * i_pad)
    return w_gu, wd, ti_eff


@functools.partial(jax.jit, static_argnames=("tm", "ti"))
def llama_mlp(x, w_gu, w_down, *, ti, tm=None):
    """x: [B, S, H]; w_gu: [H, 2*I_pad] packed; w_down: [I_pad, H] -> [B, S, H]."""
    B, S, H = x.shape
    i_pad = w_down.shape[0]
    assert w_gu.shape == (H, 2 * i_pad)
    assert i_pad % ti == 0

    bx = x.dtype.itemsize
    bw = w_gu.dtype.itemsize
    gran = 8 * max(1, 4 // bx)               # (8,128) f32 vregs, (16,128) bf16

    if tm is None:
        tm = _default_tm()

    M = B * S
    x2 = x.reshape(M, H)

    if M > tm:
        assert tm % gran == 0, "tm must be a multiple of the sublane granularity"
        tm_eff = tm
    elif M > gran:
        # Small-M (decode) path: expose >=2 "parallel" row tiles so both v7x
        # TensorCores get work.
        tm_eff = _round_up(-(-M // 2), gran)
    else:
        tm_eff = gran

    # Fit the (conservatively double-buffered) working set in per-core VMEM.
    budget = _vmem_budget_bytes()
    headroom = 8 << 20                       # compiler-internal f32 gu/h temps

    def working_set(tm_e):
        return (2 * tm_e * H * bx            # x tiles
                + 2 * H * (2 * ti) * bw      # fused [gate|up] weight tiles
                + 2 * ti * H * bw            # down-proj weight tiles
                + 2 * tm_e * H * bx          # output tiles
                + tm_e * H * 4               # f32 accumulator scratch
                + tm_e * 3 * ti * 4)         # gu/h f32 intermediates estimate

    while working_set(tm_eff) + headroom > budget and tm_eff > gran:
        tm_eff = max(gran, _round_up(tm_eff // 2, gran))

    m_pad = _round_up(M, tm_eff)
    if m_pad != M:
        x2 = jnp.pad(x2, ((0, m_pad - M), (0, 0)))

    m_tiles = m_pad // tm_eff
    grid = (m_tiles, i_pad // ti)            # reduction axis (I) last

    vmem_limit = min(budget,
                     max(32 << 20, int(working_set(tm_eff) * 1.2) + headroom))

    cost = pl.CostEstimate(
        flops=6 * m_pad * H * i_pad,
        transcendentals=m_pad * i_pad,
        # Weights are re-streamed once per row tile.
        bytes_accessed=2 * m_pad * H * bx + m_tiles * 3 * H * i_pad * bw,
    )

    out2 = pl.pallas_call(
        _mlp_kernel,
        out_shape=jax.ShapeDtypeStruct((m_pad, H), x.dtype),
        grid_spec=pltpu.PrefetchScalarGridSpec(
            num_scalar_prefetch=0,
            grid=grid,
            in_specs=[
                # x rows: reused across j -> single buffer is enough.
                _spec((tm_eff, H), lambda i, j: (i, 0), single_buffer=True),
                _spec((H, 2 * ti), lambda i, j: (0, j)),   # [gate_j | up_j]
                _spec((ti, H), lambda i, j: (j, 0)),       # down rows tile
            ],
            out_specs=_spec((tm_eff, H), lambda i, j: (i, 0), single_buffer=True),
            scratch_shapes=[pltpu.VMEM((tm_eff, H), jnp.float32)],
        ),
        compiler_params=pltpu.CompilerParams(
            dimension_semantics=("parallel", "arbitrary"),
            vmem_limit_bytes=vmem_limit,
        ),
        cost_estimate=cost,
    )(x2, w_gu, w_down)

    return out2[:M].reshape(B, S, H)


def _reference(x, w_gate, w_up, w_down):
    xf = x.astype(jnp.float32)
    g = jnp.einsum("bsh,hi->bsi", xf, w_gate.astype(jnp.float32))
    u = jnp.einsum("bsh,hi->bsi", xf, w_up.astype(jnp.float32))
    h = jax.nn.silu(g) * u
    return jnp.einsum("bsi,ih->bsh", h, w_down.astype(jnp.float32))


if __name__ == "__main__":
    # --- Test 1: small shapes, f32 everything (single I tile, 2 row tiles). ---
    B, S, H, I = 2, 8, 32, 64
    key = jax.random.PRNGKey(0)
    kx, kg, ku, kd = jax.random.split(key, 4)
    x = jax.random.normal(kx, (B, S, H), dtype=jnp.float32)
    # Weights stored as [in, out] (transposed vs. torch), deterministic scaled normal.
    w_gate = jax.random.normal(kg, (H, I), dtype=jnp.float32) * (1.0 / H) ** 0.5
    w_up = jax.random.normal(ku, (H, I), dtype=jnp.float32) * (1.0 / H) ** 0.5
    w_down = jax.random.normal(kd, (I, H), dtype=jnp.float32) * (1.0 / I) ** 0.5

    w_gu, w_down_p, ti = pack_llama_mlp_weights(w_gate, w_up, w_down)
    out = llama_mlp(x, w_gu, w_down_p, ti=ti)
    out = jax.block_until_ready(out)
    ref = _reference(x, w_gate, w_up, w_down)
    assert out.shape == (B, S, H)
    assert jnp.allclose(out, ref, atol=2e-4, rtol=2e-4), "f32 mismatch vs reference"

    # --- Test 2: bf16 path exercising the I-tile reduction (2 I tiles). ---
    B2, S2, H2, I2 = 2, 8, 128, 256
    k2 = jax.random.PRNGKey(0)
    kx2, kg2, ku2, kd2 = jax.random.split(k2, 4)
    xb = jax.random.normal(kx2, (B2, S2, H2), dtype=jnp.float32).astype(jnp.bfloat16)
    wg2 = (jax.random.normal(kg2, (H2, I2), jnp.float32) * (1.0 / H2) ** 0.5).astype(jnp.bfloat16)
    wu2 = (jax.random.normal(ku2, (H2, I2), jnp.float32) * (1.0 / H2) ** 0.5).astype(jnp.bfloat16)
    wd2 = (jax.random.normal(kd2, (I2, H2), jnp.float32) * (1.0 / I2) ** 0.5).astype(jnp.bfloat16)

    w_gu2, w_down_p2, ti2 = pack_llama_mlp_weights(wg2, wu2, wd2, ti=128)
    out2 = llama_mlp(xb, w_gu2, w_down_p2, ti=ti2)
    out2 = jax.block_until_ready(out2)
    ref2 = _reference(xb, wg2, wu2, wd2)
    assert out2.shape == (B2, S2, H2)
    assert jnp.allclose(out2.astype(jnp.float32), ref2, atol=3e-2, rtol=3e-2), \
        "bf16 mismatch vs reference"

    # --- Test 3: f32 activations with bf16-streamed weights (mixed path). ---
    k3 = jax.random.PRNGKey(0)
    kx3, kg3, ku3, kd3 = jax.random.split(k3, 4)
    x3 = jax.random.normal(kx3, (B2, S2, H2), dtype=jnp.float32)
    wg3 = jax.random.normal(kg3, (H2, I2), jnp.float32) * (1.0 / H2) ** 0.5
    wu3 = jax.random.normal(ku3, (H2, I2), jnp.float32) * (1.0 / H2) ** 0.5
    wd3 = jax.random.normal(kd3, (I2, H2), jnp.float32) * (1.0 / I2) ** 0.5

    w_gu3, w_down_p3, ti3 = pack_llama_mlp_weights(
        wg3, wu3, wd3, ti=128, weight_dtype=jnp.bfloat16)
    out3 = llama_mlp(x3, w_gu3, w_down_p3, ti=ti3)
    out3 = jax.block_until_ready(out3)
    ref3 = _reference(x3, wg3, wu3, wd3)
    assert out3.shape == (B2, S2, H2)
    assert jnp.allclose(out3, ref3, atol=3e-2, rtol=3e-2), \
        "bf16-weight mismatch vs reference"

    print("KERNEL_OK")
</pallas_src>

<mosaic_0001>
module attributes {stable_mosaic.version = 11 : i64} {
  func.func @_mlp_kernel(%arg0: i32, %arg1: i32, %arg2: memref<8x32xf32, #tpu.memory_space<vmem>>, %arg3: memref<32x256xf32, #tpu.memory_space<vmem>>, %arg4: memref<128x32xf32, #tpu.memory_space<vmem>>, %arg5: memref<8x32xf32, #tpu.memory_space<vmem>>, %arg6: memref<8x32xf32, #tpu.memory_space<vmem>>) attributes {dimension_semantics = [#tpu.dimension_semantics<parallel>, #tpu.dimension_semantics<arbitrary>], iteration_bounds = array<i64: 2, 1>, scalar_prefetch = 0 : i64, scratch_operands = 1 : i64, tpu.core_type = #tpu.core_type<tc>, window_params = [{pipeline_mode = #tpu.pipeline_mode<synchronous>, transform_indices = @transform_0, window_bounds = array<i64: 8, 32>}, {transform_indices = @transform_1, window_bounds = array<i64: 32, 256>}, {transform_indices = @transform_2, window_bounds = array<i64: 128, 32>}, {pipeline_mode = #tpu.pipeline_mode<synchronous>, transform_indices = @transform_3, window_bounds = array<i64: 8, 32>}]} {
    %c0_i32 = arith.constant 0 : i32
    %0 = arith.cmpi eq, %arg1, %c0_i32 : i32
    %1 = arith.extui %0 : i1 to i32
    %c0_i32_0 = arith.constant 0 : i32
    %2 = arith.cmpi ne, %1, %c0_i32_0 : i32
    scf.if %2 {
      %cst_14 = arith.constant 0.000000e+00 : f32
      %23 = vector.broadcast %cst_14 : f32 to vector<8x32xf32>
      %c0_15 = arith.constant 0 : index
      %c0_16 = arith.constant 0 : index
      %24 = vector.load %arg6[%c0_15, %c0_16] : memref<8x32xf32, #tpu.memory_space<vmem>>, vector<8x32xf32>
      tpu.vector_store %arg6[%c0_15, %c0_16], %23 {strides = array<i32>} : memref<8x32xf32, #tpu.memory_space<vmem>>, vector<8x32xf32>,
    } else {
    }
    %c0 = arith.constant 0 : index
    %c0_1 = arith.constant 0 : index
    %3 = vector.load %arg2[%c0, %c0_1] : memref<8x32xf32, #tpu.memory_space<vmem>>, vector<8x32xf32>
    %c0_2 = arith.constant 0 : index
    %c0_3 = arith.constant 0 : index
    %4 = vector.load %arg3[%c0_2, %c0_3] : memref<32x256xf32, #tpu.memory_space<vmem>>, vector<32x256xf32>
    %cst = arith.constant dense<0.000000e+00> : vector<8x256xf32>
    %5 = tpu.matmul %3, %4, %cst {dimension_numbers = #tpu.dot_dimension_numbers<[1], [0], [0], [1], [0, 0, 1, 1], [], []>} : vector<8x32xf32>, vector<32x256xf32>, vector<8x256xf32> -> vector<8x256xf32>
    %6 = vector.extract_strided_slice %5 {offsets = [0, 0], sizes = [8, 128], strides = [1, 1]} : vector<8x256xf32> to vector<8x128xf32>
    %7 = vector.extract_strided_slice %5 {offsets = [0, 128], sizes = [8, 128], strides = [1, 1]} : vector<8x256xf32> to vector<8x128xf32>
    %8 = arith.negf %6 : vector<8x128xf32>
    %9 = math.exp %8 : vector<8x128xf32>
    %cst_4 = arith.constant 1.000000e+00 : f32
    %10 = vector.broadcast %cst_4 : f32 to vector<8x128xf32>
    %11 = arith.addf %10, %9 : vector<8x128xf32>
    %12 = arith.divf %10, %11 : vector<8x128xf32>
    %13 = arith.mulf %6, %12 : vector<8x128xf32>
    %14 = arith.mulf %13, %7 : vector<8x128xf32>
    %c0_5 = arith.constant 0 : index
    %c0_6 = arith.constant 0 : index
    %15 = vector.load %arg6[%c0_5, %c0_6] : memref<8x32xf32, #tpu.memory_space<vmem>>, vector<8x32xf32>
    %c0_7 = arith.constant 0 : index
    %c0_8 = arith.constant 0 : index
    %16 = vector.load %arg4[%c0_7, %c0_8] : memref<128x32xf32, #tpu.memory_space<vmem>>, vector<128x32xf32>
    %cst_9 = arith.constant dense<0.000000e+00> : vector<8x32xf32>
    %17 = tpu.matmul %14, %16, %cst_9 {dimension_numbers = #tpu.dot_dimension_numbers<[1], [0], [0], [1], [0, 0, 1, 1], [], []>} : vector<8x128xf32>, vector<128x32xf32>, vector<8x32xf32> -> vector<8x32xf32>
    %18 = arith.addf %15, %17 : vector<8x32xf32>
    %c0_10 = arith.constant 0 : index
    %c0_11 = arith.constant 0 : index
    %19 = vector.load %arg6[%c0_10, %c0_11] : memref<8x32xf32, #tpu.memory_space<vmem>>, vector<8x32xf32>
    tpu.vector_store %arg6[%c0_10, %c0_11], %18 {strides = array<i32>} : memref<8x32xf32, #tpu.memory_space<vmem>>, vector<8x32xf32>,
    %c0_i32_12 = arith.constant 0 : i32
    %20 = arith.cmpi eq, %arg1, %c0_i32_12 : i32
    %21 = arith.extui %20 : i1 to i32
    %c0_i32_13 = arith.constant 0 : i32
    %22 = arith.cmpi ne, %21, %c0_i32_13 : i32
    scf.if %22 {
      %c0_14 = arith.constant 0 : index
      %c0_15 = arith.constant 0 : index
      %23 = vector.load %arg6[%c0_14, %c0_15] : memref<8x32xf32, #tpu.memory_space<vmem>>, vector<8x32xf32>
      %c0_16 = arith.constant 0 : index
      %c0_17 = arith.constant 0 : index
      %24 = vector.load %arg5[%c0_16, %c0_17] : memref<8x32xf32, #tpu.memory_space<vmem>>, vector<8x32xf32>
      tpu.vector_store %arg5[%c0_16, %c0_17], %23 {strides = array<i32>} : memref<8x32xf32, #tpu.memory_space<vmem>>, vector<8x32xf32>,
    } else {
    }
    return
  }
  func.func @transform_0(%arg0: i32, %arg1: i32) -> (i32, i32) {
    %c0_i32 = arith.constant 0 : i32
    %c0_i32_0 = arith.constant 0 : i32
    return %arg0, %c0_i32 : i32, i32
  }
  func.func @transform_1(%arg0: i32, %arg1: i32) -> (i32, i32) {
    %c0_i32 = arith.constant 0 : i32
    %c0_i32_0 = arith.constant 0 : i32
    return %c0_i32, %arg1 : i32, i32
  }
  func.func @transform_2(%arg0: i32, %arg1: i32) -> (i32, i32) {
    %c0_i32 = arith.constant 0 : i32
    %c0_i32_0 = arith.constant 0 : i32
    return %arg1, %c0_i32 : i32, i32
  }
  func.func @transform_3(%arg0: i32, %arg1: i32) -> (i32, i32) {
    %c0_i32 = arith.constant 0 : i32
    %c0_i32_0 = arith.constant 0 : i32
    return %arg0, %c0_i32 : i32, i32
  }
}

</mosaic_0001>

<llo_original>
// kernel: llama_mlp.1
$region0: #{llama_mlp.1}
  #allocation0 [shape = 'u32[]', space=smem, size = 0x4, offset = 0x4, fixed_abs, tag = 'smem constant byte address 0x4 - core index']
  #allocation1 [shape = 'u32[144,128]{1,0:T(1,128)}', space=vmem, size = 0x12000, scoped, tag = 'internal scratch']
  #allocation2 [shape = 'f32[8,32]{1,0:T(8,128)}', space=vmem, size = 0x1000, scoped, tag = 'scratch operand']
  %s0 = inlined_call_operand.vmem [shape: f32[16,32], index: 0, kind: input, shape index: {}]
  %s1 = inlined_call_operand.vmem [shape: f32[32,256], index: 1, kind: input, shape index: {}]
  %s2 = inlined_call_operand.vmem [shape: f32[128,32], index: 2, kind: input, shape index: {}]
  %s3 = inlined_call_operand.hbm [shape: f32[16,32], index: 3, kind: output, shape index: {}]
  %s4 = sld [smem:[#allocation0]]
  $region53: #{llama_mlp.1} parent=0
    _
  %s6 = ssub.s32 1, %s4
  %s7 = scalar_select 0, %s6, %s4
  $region1: #{llama_mlp.1} parent=0
    #allocation3 [shape = 'u8[4096]{0}', space=vmem, size = 0x1000, scoped, tag = 'output window, operand 0, single buffered']
    #allocation4 [shape = 's32[2]{0}', space=sflag, size = 0x8, scoped, tag = 'scoped memory for llama_mlp.1']
    %8 = vsyncpa [#allocation4], 0
    loop: start=0, step=1, limit=4
    $region2: #{llama_mlp.1} parent=1 // loop_pre_header
      _
    $region3: #{llama_mlp.1} parent=1 // loop_header
      %s10 = sphi 0, %s14
      %p11 = scmp.ge.s32.totalorder %s10, 4
      %s17 = sphi 0, %s29
      %s18 = sphi 0, %s25
      %s19 = sphi 0, %s17
      %s20 = sphi 0, %s18
      %s21 = sphi 0, %s19
      %s22 = sphi 0, %s20
      %s32 = sphi 0, %s34
      %s35 = sphi 0, %s32
      %s36 = sphi 0, %s35
      %s52 = sphi 0, %s36
      %s58 = sphi 0, %s60
      %s61 = sphi 0, %s58
      %s62 = sphi 0, %s61
      %s78 = sphi 0, %s62
      %s84 = sphi 0, %s86
      %s87 = sphi 0, %s84
      %s88 = sphi 0, %s87
      %s104 = sphi 0, %s88
      %s110 = sphi 0, %s112
      %s113 = sphi 0, %s110
      %s114 = sphi 0, %s113
      %s130 = sphi 0, %s114
    $region4: #{llama_mlp.1} parent=1 // loop_header_branch
      %13 = sbr.rel (%p11) target = $region8
    $region5: #{llama_mlp.1} parent=1 // loop_body
      %s15 = ssub.s32 %s10, 1
      %s16 = ssub.s32 %s10, 2
      %s23 = sadd.s32 1, %s18
      %p24 = scmp.ge.s32.totalorder %s23, 1
      %s25 = scalar_select %p24, 0, %s23
      %s26 = sadd.s32 1, %s17
      %s27 = scalar_select %p24, %s26, %s17
      %p28 = scmp.ge.s32.totalorder %s27, 2
      %s29 = scalar_select %p28, 0, %s27
      %s30 = ssub.s32 %s17, %s29
      %p31 = scmp.eq.s32.totalorder %s30, 0
      %s33 = sadd.s32 %s32, 1
      %s34 = scalar_select %p31, %s32, %s33
      %p37 = pneg %p31
      %p38 = scmp.eq.s32.totalorder %s10, 1
      %p39 = por %p37, %p38
      %p40 = scmp.ne.s32.totalorder %s32, %s35
      %p41 = scmp.eq.s32.totalorder %s10, 0
      %p42 = por %p40, %p41
      %p43 = scmp.ne.s32.totalorder %s32, %s35
      %p44 = scmp.eq.s32.totalorder %s15, 1
      %p45 = por %p43, %p44
      %p46 = scmp.ne.s32.totalorder %s35, %s36
      %p47 = scmp.eq.s32.totalorder %s15, 0
      %p48 = por %p46, %p47
      %p49 = scmp.ne.s32.totalorder %s35, %s36
      %p50 = scmp.eq.s32.totalorder %s16, 1
      %p51 = por %p49, %p50
      %p53 = scmp.ne.s32.totalorder %s36, %s52
      %p54 = scmp.eq.s32.totalorder %s16, 0
      %p55 = por %p53, %p54
      %s56 = ssub.s32 %s18, %s25
      %p57 = scmp.eq.s32.totalorder %s56, 0
      %s59 = sadd.s32 %s58, 1
      %s60 = scalar_select %p57, %s58, %s59
      %p63 = pneg %p57
      %p64 = scmp.eq.s32.totalorder %s10, 1
      %p65 = por %p63, %p64
      %p66 = scmp.ne.s32.totalorder %s58, %s61
      %p67 = scmp.eq.s32.totalorder %s10, 0
      %p68 = por %p66, %p67
      %p69 = scmp.ne.s32.totalorder %s58, %s61
      %p70 = scmp.eq.s32.totalorder %s15, 1
      %p71 = por %p69, %p70
      %p72 = scmp.ne.s32.totalorder %s61, %s62
      %p73 = scmp.eq.s32.totalorder %s15, 0
      %p74 = por %p72, %p73
      %p75 = scmp.ne.s32.totalorder %s61, %s62
      %p76 = scmp.eq.s32.totalorder %s16, 1
      %p77 = por %p75, %p76
      %p79 = scmp.ne.s32.totalorder %s62, %s78
      %p80 = scmp.eq.s32.totalorder %s16, 0
      %p81 = por %p79, %p80
      %s82 = ssub.s32 %s18, %s25
      %p83 = scmp.eq.s32.totalorder %s82, 0
      %s85 = sadd.s32 %s84, 1
      %s86 = scalar_select %p83, %s84, %s85
      %p89 = pneg %p83
      %p90 = scmp.eq.s32.totalorder %s10, 1
      %p91 = por %p89, %p90
      %p92 = scmp.ne.s32.totalorder %s84, %s87
      %p93 = scmp.eq.s32.totalorder %s10, 0
      %p94 = por %p92, %p93
      %p95 = scmp.ne.s32.totalorder %s84, %s87
      %p96 = scmp.eq.s32.totalorder %s15, 1
      %p97 = por %p95, %p96
      %p98 = scmp.ne.s32.totalorder %s87, %s88
      %p99 = scmp.eq.s32.totalorder %s15, 0
      %p100 = por %p98, %p99
      %p101 = scmp.ne.s32.totalorder %s87, %s88
      %p102 = scmp.eq.s32.totalorder %s16, 1
      %p103 = por %p101, %p102
      %p105 = scmp.ne.s32.totalorder %s88, %s104
      %p106 = scmp.eq.s32.totalorder %s16, 0
      %p107 = por %p105, %p106
      %s108 = ssub.s32 %s17, %s29
      %p109 = scmp.eq.s32.totalorder %s108, 0
      %s111 = sadd.s32 %s110, 1
      %s112 = scalar_select %p109, %s110, %s111
      %p115 = pneg %p109
      %p116 = scmp.eq.s32.totalorder %s10, 1
      %p117 = por %p115, %p116
      %p118 = scmp.ne.s32.totalorder %s110, %s113
      %p119 = scmp.eq.s32.totalorder %s10, 0
      %p120 = por %p118, %p119
      %p121 = scmp.ne.s32.totalorder %s110, %s113
      %p122 = scmp.eq.s32.totalorder %s15, 1
      %p123 = por %p121, %p122
      %p124 = scmp.ne.s32.totalorder %s113, %s114
      %p125 = scmp.eq.s32.totalorder %s15, 0
      %p126 = por %p124, %p125
      %p127 = scmp.ne.s32.totalorder %s113, %s114
      %p128 = scmp.eq.s32.totalorder %s16, 1
      %p129 = por %p127, %p128
      %p131 = scmp.ne.s32.totalorder %s114, %s130
      %p132 = scmp.eq.s32.totalorder %s16, 0
      %p133 = por %p131, %p132
      %p134 = scmp.le.s32.totalorder 1, %s10
      %p135 = scmp.lt.s32.totalorder %s10, 3
      %p136 = pnand %p134, %p135
      %p137 = pneg %p136
      // Predicated region
      $region9: #{llama_mlp.1} parent=5 // pred_check
        _
      $region10: #{llama_mlp.1} parent=5 // pred_check_branch
        %139 = sbr.rel (%p136) target = $region12
      $region11: #{llama_mlp.1} parent=5 // pred_region
        %s140 = ssub.s32 %s10, 1
        // Predicated region
        $region13: #{llama_mlp.1} parent=11 // pred_check
          %p141 = pneg %p48
        $region14: #{llama_mlp.1} parent=11 // pred_check_branch
          %143 = sbr.rel (%p141) target = $region16
        $region15: #{llama_mlp.1} parent=11 // pred_region
          %p144 = scmp.lt.s32.totalorder %s19, 1
          %s145 = scalar_select %p144, %s19, 1
          %s146 = smul.addr %s145, 8
          %s147 = scalar_lea.vmem %s0, %s146
        $region16: #{llama_mlp.1} parent=11 // pred_fallthru
          _
        // Predicated region
        $region17: #{llama_mlp.1} parent=11 // pred_check
          %p148 = pneg %p74
        $region18: #{llama_mlp.1} parent=11 // pred_check_branch
          %150 = sbr.rel (%p148) target = $region20
        $region19: #{llama_mlp.1} parent=11 // pred_region
          %s151 = smul.u32 2, %s20
          %p152 = scmp.lt.s32.totalorder %s151, 1
          %s153 = scalar_select %p152, %s151, 1
          %s154 = smul.addr %s153, 8
          %s155 = scalar_lea.vmem %s1, %s154
          %s156 = smul.u32 2, %s20
        $region20: #{llama_mlp.1} parent=11 // pred_fallthru
          _
        // Predicated region
        $region21: #{llama_mlp.1} parent=11 // pred_check
          %p157 = pneg %p100
        $region22: #{llama_mlp.1} parent=11 // pred_check_branch
          %159 = sbr.rel (%p157) target = $region24
        $region23: #{llama_mlp.1} parent=11 // pred_region
          %s160 = smul.u32 16, %s20
          %p161 = scmp.lt.s32.totalorder %s160, 15
          %s162 = scalar_select %p161, %s160, 15
          %s163 = smul.addr %s162, 8
          %s164 = scalar_lea.vmem %s2, %s163
          %s165 = smul.u32 16, %s20
        $region24: #{llama_mlp.1} parent=11 // pred_fallthru
          _
      $region12: #{llama_mlp.1} parent=5 // pred_fallthru
        _
      %p166 = scmp.lt.s32.totalorder %s10, 2
      // Predicated region
      $region25: #{llama_mlp.1} parent=5 // pred_check
        %p167 = pneg %p166
      $region26: #{llama_mlp.1} parent=5 // pred_check_branch
        %169 = sbr.rel (%p167) target = $region28
      $region27: #{llama_mlp.1} parent=5 // pred_region
        _
      $region28: #{llama_mlp.1} parent=5 // pred_fallthru
        _
      %p170 = scmp.le.s32.totalorder 1, %s10
      %p171 = scmp.lt.s32.totalorder %s10, 3
      %p172 = pnand %p170, %p171
      %p173 = pneg %p172
      // Predicated region
      $region29: #{llama_mlp.1} parent=5 // pred_check
        _
      $region30: #{llama_mlp.1} parent=5 // pred_check_branch
        %175 = sbr.rel (%p172) target = $region32
      $region31: #{llama_mlp.1} parent=5 // pred_region
        %s176 = ssub.s32 %s10, 1
        %p177 = scmp.lt.s32.totalorder %s19, 1
        %s178 = scalar_select %p177, %s19, 1
        %s179 = smul.addr %s178, 8
        %s180 = scalar_lea.vmem %s0, %s179
        %p181 = pneg %p48
        %p182 = pneg %p45
        %s183 = smul.u32 2, %s20
        %p184 = scmp.lt.s32.totalorder %s183, 1
        %s185 = scalar_select %p184, %s183, 1
        %s186 = smul.addr %s185, 8
        %s187 = scalar_lea.vmem %s1, %s186
        %p188 = pneg %p74
        %p189 = pneg %p71
        %s190 = smul.u32 16, %s20
        %p191 = scmp.lt.s32.totalorder %s190, 15
        %s192 = scalar_select %p191, %s190, 15
        %s193 = smul.addr %s192, 8
        %s194 = scalar_lea.vmem %s2, %s193
        %p195 = pneg %p100
        %p196 = pneg %p97
        %p197 = pneg %p126
        %p198 = pneg %p123
        %p199 = scmp.lt.s32.totalorder %s19, 1
        %s200 = scalar_select %p199, %s19, 1
        %s201 = smul.addr %s200, 8
        %s202 = scalar_lea.vmem %s0, %s201
        %s203 = smul.u32 2, %s20
        %p204 = scmp.lt.s32.totalorder %s203, 1
        %s205 = scalar_select %p204, %s203, 1
        %s206 = smul.addr %s205, 8
        %s207 = scalar_lea.vmem %s1, %s206
        %s208 = smul.u32 2, %s20
        %s209 = smul.u32 16, %s20
        %p210 = scmp.lt.s32.totalorder %s209, 15
        %s211 = scalar_select %p210, %s209, 15
        %s212 = smul.addr %s211, 8
        %s213 = scalar_lea.vmem %s2, %s212
        %s214 = smul.u32 16, %s20
        %p215 = scmp.eq.s32.totalorder %s20, 0
        // Predicated region
        $region33: #{llama_mlp.1} parent=31 // pred_check
          %p216 = pneg %p215
        $region34: #{llama_mlp.1} parent=31 // pred_check_branch
          %218 = sbr.rel (%p216) target = $region36
        $region35: #{llama_mlp.1} parent=31 // pred_region
          %vm219 = vcmask 261120
          %220 = vst.msk [vmem:[#allocation2] sm:$0xff] %vm219, 0.0
        $region36: #{llama_mlp.1} parent=31 // pred_fallthru
          _
        %v221 = vld [vmem:[%s202] sm:$0xff]
        %v222 = vld [vmem:[%s207] sm:$0xff]
        %v223 = vld [vmem:[%s207 + $0x8] sm:$0xff]
        %v224 = vld [vmem:[%s207 + $0x10] sm:$0xff]
        %v225 = vld [vmem:[%s207 + $0x18] sm:$0xff]
        %v226 = vld [vmem:[%s207 + $0x20] sm:$0xff]
        %v227 = vld [vmem:[%s207 + $0x28] sm:$0xff]
        %v228 = vld [vmem:[%s207 + $0x30] sm:$0xff]
        %v229 = vld [vmem:[%s207 + $0x38] sm:$0xff]
        %vm230 = vcmask 261120
        %v232 = vsel %vm230, %v221, 0
        %234 = vmatprep.subr.mxu0 %v223
        %235 = vmatpush1.msra.mxu0 %v222
        %236 = vmatprep.subr.mxu0 %v225
        %237 = vmatpush1.msra.mxu0 %v224
        %238 = vmatprep.subr.mxu0 %v227
        %239 = vmatpush1.msra.mxu0 %v226
        %240 = vmatprep.subr.mxu0 %v229
        %241 = vmatpush1.msra.mxu0 %v228
        %242 = vmatprep.subr.mxu0 0.0
        %243 = vmatpush1.msra.mxu0 0.0
        %244 = vmatprep.subr.mxu0 0.0
        %245 = vmatpush1.msra.mxu0 0.0
        %246 = vmatprep.subr.mxu0 0.0
        %247 = vmatpush1.msra.mxu0 0.0
        %248 = vmatprep.subr.mxu0 0.0
        %249 = vmatpush1.msra.mxu0 0.0
        %250 = vmatprep.subr.mxu0 0.0
        %251 = vmatpush1.msra.mxu0 0.0
        %252 = vmatprep.subr.mxu0 0.0
        %253 = vmatpush1.msra.mxu0 0.0
        %254 = vmatprep.subr.mxu0 0.0
        %255 = vmatpush1.msra.mxu0 0.0
        %256 = vmatprep.subr.mxu0 0.0
        %257 = vmatpush1.msra.mxu0 0.0
        %258 = vmatprep.subr.mxu0 0.0
        %259 = vmatpush1.msra.mxu0 0.0
        %260 = vmatprep.subr.mxu0 0.0
        %261 = vmatpush1.msra.mxu0 0.0
        %262 = vmatprep.subr.mxu0 0.0
        %263 = vmatpush1.msra.mxu0 0.0
        %264 = vmatprep.subr.mxu0 0.0
        %265 = vmatpush1.msra.mxu0 0.0
        %266 = vmatprep.subr.mxu0 0.0
        %267 = vmatpush1.msra.mxu0 0.0
        %268 = vmatprep.subr.mxu0 0.0
        %269 = vmatpush1.msra.mxu0 0.0
        %270 = vmatprep.subr.mxu0 0.0
        %271 = vmatpush1.msra.mxu0 0.0
        %272 = vmatprep.subr.mxu0 0.0
        %273 = vmatpush1.msra.mxu0 0.0
        %274 = vmatprep.subr.mxu0 0.0
        %275 = vmatpush1.msra.mxu0 0.0
        %276 = vmatprep.subr.mxu0 0.0
        %277 = vmatpush1.msra.mxu0 0.0
        %278 = vmatprep.subr.mxu0 0.0
        %279 = vmatpush1.msra.mxu0 0.0
        %280 = vmatprep.subr.mxu0 0.0
        %281 = vmatpush1.msra.mxu0 0.0
        %282 = vmatprep.subr.mxu0 0.0
        %283 = vmatpush1.msra.mxu0 0.0
        %284 = vmatprep.subr.mxu0 0.0
        %285 = vmatpush1.msra.mxu0 0.0
        %286 = vmatprep.subr.mxu0 0.0
        %287 = vmatpush1.msra.mxu0 0.0
        %288 = vmatprep.subr.mxu0 0.0
        %289 = vmatpush1.msra.mxu0 0.0
        %290 = vmatprep.subr.mxu0 0.0
        %291 = vmatpush1.msra.mxu0 0.0
        %292 = vmatprep.subr.mxu0 0.0
        %293 = vmatpush1.msra.mxu0 0.0
        %294 = vmatprep.subr.mxu0 0.0
        %295 = vmatpush1.msra.mxu0 0.0
        %296 = vmatprep.subr.mxu0 0.0
        %297 = vmatpush1.msra.mxu0 0.0
        %298 = vmatprep.mubr.f32.mxu0 0.0
        %299 = vmatmul.mubr.f32.gmra.mrb[0].mxu0 %v232
        %v300 = vpop.f32.mrb[0].mxu0
        %v301 = vadd.f32 0.0, %v300
        %v302 = vpop.f32.mrb[0].mxu0
        %v303 = vadd.f32 0.0, %v302
        %304 = vdwg.mxu0
        %v305 = vxor.u32 %v301, 2147483648
        %v306 = vmul.f32 %v305, 1.442695
        %v307 = vpow.pop %v306
        %v308 = vadd.f32 %v307, 1.0
        %v309 = vrcp.pop %v308
        %v310 = vmul.f32 1.0, %v309
        %v311 = vmul.f32 %v301, %v310
        %v312 = vmul.f32 %v311, %v303
        %v313 = vld [vmem:[#allocation2] sm:$0xff]
        %v314 = vld [vmem:[%s213] sm:$0xff]
        %v315 = vld [vmem:[%s213 + $0x8] sm:$0xff]
        %v316 = vld [vmem:[%s213 + $0x10] sm:$0xff]
        %v317 = vld [vmem:[%s213 + $0x18] sm:$0xff]
        %v318 = vld [vmem:[%s213 + $0x20] sm:$0xff]
        %v319 = vld [vmem:[%s213 + $0x28] sm:$0xff]
        %v320 = vld [vmem:[%s213 + $0x30] sm:$0xff]
        %v321 = vld [vmem:[%s213 + $0x38] sm:$0xff]
        %v322 = vld [vmem:[%s213 + $0x40] sm:$0xff]
        %v323 = vld [vmem:[%s213 + $0x48] sm:$0xff]
        %v324 = vld [vmem:[%s213 + $0x50] sm:$0xff]
        %v325 = vld [vmem:[%s213 + $0x58] sm:$0xff]
        %v326 = vld [vmem:[%s213 + $0x60] sm:$0xff]
        %v327 = vld [vmem:[%s213 + $0x68] sm:$0xff]
        %v328 = vld [vmem:[%s213 + $0x70] sm:$0xff]
        %v329 = vld [vmem:[%s213 + $0x78] sm:$0xff]
        %330 = vmatprep.subr.mxu0 0.0
        %331 = vmatpush1.msra.mxu0 %v314
        %332 = vmatprep.subr.mxu0 0.0
        %333 = vmatpush1.msra.mxu0 %v315
        %334 = vmatprep.subr.mxu0 0.0
        %335 = vmatpush1.msra.mxu0 %v316
        %336 = vmatprep.subr.mxu0 0.0
        %337 = vmatpush1.msra.mxu0 %v317
        %338 = vmatprep.subr.mxu0 0.0
        %339 = vmatpush1.msra.mxu0 %v318
        %340 = vmatprep.subr.mxu0 0.0
        %341 = vmatpush1.msra.mxu0 %v319
        %342 = vmatprep.subr.mxu0 0.0
        %343 = vmatpush1.msra.mxu0 %v320
        %344 = vmatprep.subr.mxu0 0.0
        %345 = vmatpush1.msra.mxu0 %v321
        %346 = vmatprep.subr.mxu0 0.0
        %347 = vmatpush1.msra.mxu0 %v322
        %348 = vmatprep.subr.mxu0 0.0
        %349 = vmatpush1.msra.mxu0 %v323
        %350 = vmatprep.subr.mxu0 0.0
        %351 = vmatpush1.msra.mxu0 %v324
        %352 = vmatprep.subr.mxu0 0.0
        %353 = vmatpush1.msra.mxu0 %v325
        %354 = vmatprep.subr.mxu0 0.0
        %355 = vmatpush1.msra.mxu0 %v326
        %356 = vmatprep.subr.mxu0 0.0
        %357 = vmatpush1.msra.mxu0 %v327
        %358 = vmatprep.subr.mxu0 0.0
        %359 = vmatpush1.msra.mxu0 %v328
        %360 = vmatprep.subr.mxu0 0.0
        %361 = vmatpush1.msra.mxu0 %v329
        %362 = vmatprep.subr.mxu0 0.0
        %363 = vmatpush1.msra.mxu0 0.0
        %364 = vmatprep.subr.mxu0 0.0
        %365 = vmatpush1.msra.mxu0 0.0
        %366 = vmatprep.subr.mxu0 0.0
        %367 = vmatpush1.msra.mxu0 0.0
        %368 = vmatprep.subr.mxu0 0.0
        %369 = vmatpush1.msra.mxu0 0.0
        %370 = vmatprep.subr.mxu0 0.0
        %371 = vmatpush1.msra.mxu0 0.0
        %372 = vmatprep.subr.mxu0 0.0
        %373 = vmatpush1.msra.mxu0 0.0
        %374 = vmatprep.subr.mxu0 0.0
        %375 = vmatpush1.msra.mxu0 0.0
        %376 = vmatprep.subr.mxu0 0.0
        %377 = vmatpush1.msra.mxu0 0.0
        %378 = vmatprep.subr.mxu0 0.0
        %379 = vmatpush1.msra.mxu0 0.0
        %380 = vmatprep.subr.mxu0 0.0
        %381 = vmatpush1.msra.mxu0 0.0
        %382 = vmatprep.subr.mxu0 0.0
        %383 = vmatpush1.msra.mxu0 0.0
        %384 = vmatprep.subr.mxu0 0.0
        %385 = vmatpush1.msra.mxu0 0.0
        %386 = vmatprep.subr.mxu0 0.0
        %387 = vmatpush1.msra.mxu0 0.0
        %388 = vmatprep.subr.mxu0 0.0
        %389 = vmatpush1.msra.mxu0 0.0
        %390 = vmatprep.subr.mxu0 0.0
        %391 = vmatpush1.msra.mxu0 0.0
        %392 = vmatprep.subr.mxu0 0.0
        %393 = vmatpush1.msra.mxu0 0.0
        %394 = vmatprep.mubr.f32.mxu0 0.0
        %395 = vmatmul.mubr.f32.gmra.mrb[0].mxu0 %v312
        %v396 = vpop.f32.mrb[0].mxu0
        %v397 = vadd.f32 0.0, %v396
        %v398 = vpop.f32.mrb[0].mxu0
        %399 = vdwg.mxu0
        %v400 = vadd.f32 %v313, %v397
        %401 = vst.msk [vmem:[#allocation2] sm:$0xff] %vm230, %v400
        // Predicated region
        $region37: #{llama_mlp.1} parent=31 // pred_check
          %p402 = pneg %p215
        $region38: #{llama_mlp.1} parent=31 // pred_check_branch
          %404 = sbr.rel (%p402) target = $region40
        $region39: #{llama_mlp.1} parent=31 // pred_region
          %v405 = vld [vmem:[#allocation2] sm:$0xff]
          %406 = vst.msk [vmem:[#allocation3] sm:$0xff] %vm230, %v405
        $region40: #{llama_mlp.1} parent=31 // pred_fallthru
          _
        // Predicated region
        $region41: #{llama_mlp.1} parent=31 // pred_check
          %p407 = pneg %p123
        $region42: #{llama_mlp.1} parent=31 // pred_check_branch
          %409 = sbr.rel (%p407) target = $region44
        $region43: #{llama_mlp.1} parent=31 // pred_region
          %s411 = ssub.s32 128, 128
          %412 = vsyncadd [#allocation4], %s411
          %s413 = smul.addr %s19, 128
          %s414 = scalar_lea.hbm %s3, %s413
          %s416 = sshll.u32 [#allocation3], 4
          %s417 = int_to_ptr.vmem [resolvable:$true] %s416
          %419 = dma.vmem_to_hbm [thread:$0]  %s417, 128, %s414, [#allocation4]
        $region44: #{llama_mlp.1} parent=31 // pred_fallthru
          _
        // Predicated region
        $region45: #{llama_mlp.1} parent=31 // pred_check
          %p420 = pneg %p123
        $region46: #{llama_mlp.1} parent=31 // pred_check_branch
          %422 = sbr.rel (%p420) target = $region48
        $region47: #{llama_mlp.1} parent=31 // pred_region
          %423 = dma.done [#allocation4], 128
        $region48: #{llama_mlp.1} parent=31 // pred_fallthru
          _
      $region32: #{llama_mlp.1} parent=5 // pred_fallthru
        _
      %p424 = scmp.le.s32.totalorder 2, %s10
      // Predicated region
      $region49: #{llama_mlp.1} parent=5 // pred_check
        %p425 = pneg %p424
      $region50: #{llama_mlp.1} parent=5 // pred_check_branch
        %427 = sbr.rel (%p425) target = $region52
      $region51: #{llama_mlp.1} parent=5 // pred_region
        %s428 = ssub.s32 %s10, 2
      $region52: #{llama_mlp.1} parent=5 // pred_fallthru
        _
    $region6: #{llama_mlp.1} parent=1 // loop_footer
      %s14 = sadd.s32 1, %s10
    $region7: #{llama_mlp.1} parent=1 // loop_footer_branch
      %9 = sbr.rel target = $region3
    $region8: #{llama_mlp.1} parent=1 // loop_exit
      _
    %429 = vsyncpa [#allocation4], 1
    %s430 = scalar_lea.sflag [#allocation4], 1
    %431 = vsyncpa %s430, 1

</llo_original>
